<compile_context>
chip_gen: v6e
topology: v6e:2x2x1
jax: 0.10.0
libtpu: 0.0.40
codegen_flags: <defaults>
</compile_context>

<pallas_src>
import functools

import jax
import jax.numpy as jnp
from jax import lax
from jax.experimental import pallas as pl
from jax.experimental.pallas import tpu as pltpu


def _pad8(n):
    return ((n + 7) // 8) * 8


# ----------------------------------------------------------------------------
# Tiny runtime probe (cached): pltpu.roll rotation direction.
# The in-kernel im2col is built from circular rolls; the shift sign must match
# the hardware rotate direction, so verify it once instead of assuming it.
# ----------------------------------------------------------------------------
@functools.cache
def _roll_matches_numpy():
    def k(x_ref, o_ref):
        o_ref[...] = pltpu.roll(x_ref[...], shift=1, axis=1)

    x = jnp.tile(jnp.arange(128, dtype=jnp.float32)[None, :], (8, 1))
    y = pl.pallas_call(
        k, out_shape=jax.ShapeDtypeStruct((8, 128), jnp.float32))(x)
    # numpy convention: out[j] = x[(j - shift) % n]  ->  out[0] == 127
    return bool(y[0, 0] == 127.0)


# ----------------------------------------------------------------------------
# Trace-time constant builders (tiny; constant-folded under jit)
# ----------------------------------------------------------------------------
def _interp_matrix(n_in, n_out):
    """PyTorch bilinear align_corners=True interpolation weights, (n_out, n_in)."""
    if n_in == 1:
        return jnp.ones((n_out, 1), jnp.float32)
    pos = jnp.arange(n_out, dtype=jnp.float32) * (n_in - 1) / (n_out - 1)
    i0 = jnp.clip(jnp.floor(pos).astype(jnp.int32), 0, n_in - 2)
    frac = pos - i0.astype(jnp.float32)
    src = jnp.arange(n_in)
    a0 = (src[None, :] == i0[:, None]).astype(jnp.float32) * (1.0 - frac)[:, None]
    a1 = (src[None, :] == (i0 + 1)[:, None]).astype(jnp.float32) * frac[:, None]
    return a0 + a1


def _upsample_matrix(H, W):
    """(H*W, 4*H*W) matrix M so that flat(x) @ M == flat(bilinear x2 upsample)."""
    ah = _interp_matrix(H, 2 * H)                       # (2H, H)
    aw = _interp_matrix(W, 2 * W)                       # (2W, W)
    # M[h*W + w, o*(2W) + p] = ah[o, h] * aw[p, w]   (outer product, exact)
    return jnp.einsum("oh,pw->hwop", ah, aw).reshape(H * W, 4 * H * W)


def _tap_masks(H2, W2):
    """(9, H2*W2) f32 validity masks for the 3x3 / pad=1 taps, tap-major."""
    hw = H2 * W2
    col = jnp.arange(hw, dtype=jnp.int32) % W2
    row = jnp.arange(hw, dtype=jnp.int32) // W2
    ms = []
    for dy in (-1, 0, 1):
        for dx in (-1, 0, 1):
            ok = ((col + dx >= 0) & (col + dx < W2) &
                  (row + dy >= 0) & (row + dy < H2))
            ms.append(ok.astype(jnp.float32))
    return jnp.stack(ms, axis=0)


# ----------------------------------------------------------------------------
# The fused DRM_v3 kernel (one grid step = one batch element)
# ----------------------------------------------------------------------------
def _make_drm_kernel(Cp1, Cp2, Cp3, H2, W2, roll_numpy):
    hw = H2 * W2
    shifts = []
    for dy in (-1, 0, 1):
        for dx in (-1, 0, 1):
            s = dy * W2 + dx                     # tap[i] = fm[i + s] (masked)
            shifts.append(((-s) if roll_numpy else s) % hw)
    shifts = tuple(shifts)

    def kernel(x1_ref, x2_ref, x3_ref, upmat_ref, masks_ref,
               w124_ref, b124_ref, w3_ref, b3_ref,
               w2a_ref, w2b_ref, b2_ref, w5_ref, b5_ref,
               w3a_ref, w3b_ref, b3c_ref, w4_ref, b4_ref,
               o_ref):
        f32 = jnp.float32
        masks = masks_ref[...]                                  # (9, HW)

        def im2col(fm):
            """(Cin_p, HW) -> (9*Cin_p, HW) 3x3/pad=1 patches, tap-major."""
            taps = []
            for t, s in enumerate(shifts):
                if s == 0:                       # centre tap, always in-bounds
                    taps.append(fm)
                else:
                    taps.append(pltpu.roll(fm, shift=s, axis=1)
                                * masks[t:t + 1, :])
            return jnp.concatenate(taps, axis=0)

        def conv(fm, w_ref, b_ref):
            acc = jnp.dot(w_ref[...], im2col(fm), preferred_element_type=f32)
            return jnp.maximum(acc + b_ref[...], 0.0)

        def conv_split(fm_a, fm_b, wa_ref, wb_ref, b_ref):
            # conv over channel-concat(fm_a, fm_b) without materializing it
            acc = jnp.dot(wa_ref[...], im2col(fm_a), preferred_element_type=f32)
            acc = acc + jnp.dot(wb_ref[...], im2col(fm_b),
                                preferred_element_type=f32)
            return jnp.maximum(acc + b_ref[...], 0.0)

        x2 = x2_ref[0]                                          # (Cp1, HW)
        x3 = x3_ref[0]

        # upsample(x1): bilinear x2 (align_corners=True) as one MXU matmul
        up = jnp.dot(x1_ref[0], upmat_ref[...], preferred_element_type=f32)

        # conv_upsample{1,2,4}(upsample(x1)) in one Cout-stacked matmul
        y124 = conv(up, w124_ref, b124_ref)                     # (3*Cp1, HW)
        c1 = y124[0:Cp1]
        c2 = y124[Cp1:2 * Cp1]
        c4 = y124[2 * Cp1:3 * Cp1]

        c3 = conv(x2, w3_ref, b3_ref)                           # conv_upsample3(x2)

        x2_1 = c1 * x2
        x3_1 = c2 * c3 * x3

        # x2_2 = conv_concat2(cat(x2_1, conv_upsample4(up)))
        x2_2 = conv_split(x2_1, c4, w2a_ref, w2b_ref, b2_ref)   # (Cp2, HW)
        u5 = conv(x2_2, w5_ref, b5_ref)                         # conv_upsample5

        # x3_2 = conv_concat3(cat(x3_1, conv_upsample5(x2_2)))
        x3_2 = conv_split(x3_1, u5, w3a_ref, w3b_ref, b3c_ref)  # (Cp3, HW)

        # conv4(x3_2) -> final output (lane-dense, unmasked full-tile store)
        o_ref[0] = conv(x3_2, w4_ref, b4_ref)                   # (Cp1, HW)

    return kernel


# ----------------------------------------------------------------------------
# Parameters
# ----------------------------------------------------------------------------
def make_basic_conv_params(key, cin, cout, eps=1e-5):
    """Synthetic BasicConv2d params (PyTorch layout w: (Cout, Cin, 3, 3));
    eval-mode BatchNorm pre-reduced to per-channel scale/bias."""
    k1, k2, k3, k4, k5 = jax.random.split(key, 5)
    w = jax.random.normal(k1, (cout, cin, 3, 3), jnp.float32) * 0.1
    gamma = 1.0 + 0.1 * jax.random.normal(k2, (cout,), jnp.float32)
    beta = 0.1 * jax.random.normal(k3, (cout,), jnp.float32)
    mean = 0.1 * jax.random.normal(k4, (cout,), jnp.float32)
    var = 1.0 + 0.1 * jnp.abs(jax.random.normal(k5, (cout,), jnp.float32))
    scale = gamma / jnp.sqrt(var + eps)
    bias = beta - mean * scale
    return {"w": w, "scale": scale, "bias": bias}


def init_drm_v3_params(key, channel):
    ks = jax.random.split(key, 8)
    return {
        "conv_upsample1": make_basic_conv_params(ks[0], channel, channel),
        "conv_upsample2": make_basic_conv_params(ks[1], channel, channel),
        "conv_upsample3": make_basic_conv_params(ks[2], channel, channel),
        "conv_upsample4": make_basic_conv_params(ks[3], channel, channel),
        "conv_upsample5": make_basic_conv_params(ks[4], 2 * channel, 2 * channel),
        "conv_concat2":   make_basic_conv_params(ks[5], 2 * channel, 2 * channel),
        "conv_concat3":   make_basic_conv_params(ks[6], 3 * channel, 3 * channel),
        "conv4":          make_basic_conv_params(ks[7], 3 * channel, channel),
    }


def _fold_flat(p, cin_lo, cin_hi, cin_pad, cout_pad):
    """Fold the BN scale into the conv weight (in f32), select input channels
    [cin_lo:cin_hi], zero-pad, and flatten to (cout_pad, 9*cin_pad) tap-major /
    channel-minor -- matching the in-kernel im2col layout."""
    w = p["w"][:, cin_lo:cin_hi] * p["scale"][:, None, None, None]
    cout, cin = w.shape[0], w.shape[1]
    w = jnp.transpose(w, (0, 2, 3, 1))                     # (cout, 3, 3, cin)
    w = jnp.pad(w, ((0, cout_pad - cout), (0, 0), (0, 0), (0, cin_pad - cin)))
    return w.reshape(cout_pad, 9 * cin_pad)


def _pad_bias(p, cout_pad):
    b = p["bias"]
    return jnp.pad(b, (0, cout_pad - b.shape[0])).reshape(cout_pad, 1)


def prepare_drm_v3_params(raw, channel):
    """Re-layout params for the fused kernel: BN-scale folded into weights,
    channel counts padded to multiples of 8, conv_upsample{1,2,4} stacked,
    concat convs split along Cin."""
    C = channel
    Cp1, Cp2, Cp3 = _pad8(C), _pad8(2 * C), _pad8(3 * C)
    cu1, cu2 = raw["conv_upsample1"], raw["conv_upsample2"]
    cu3, cu4 = raw["conv_upsample3"], raw["conv_upsample4"]
    cu5, cc2 = raw["conv_upsample5"], raw["conv_concat2"]
    cc3, cv4 = raw["conv_concat3"], raw["conv4"]
    return {
        "w124": jnp.concatenate([_fold_flat(cu1, 0, C, Cp1, Cp1),
                                 _fold_flat(cu2, 0, C, Cp1, Cp1),
                                 _fold_flat(cu4, 0, C, Cp1, Cp1)], axis=0),
        "b124": jnp.concatenate([_pad_bias(cu1, Cp1), _pad_bias(cu2, Cp1),
                                 _pad_bias(cu4, Cp1)], axis=0),
        "w3": _fold_flat(cu3, 0, C, Cp1, Cp1),
        "b3": _pad_bias(cu3, Cp1),
        # conv_concat2 Cin split: [x2_1 (C) | conv_upsample4 out (C)]
        "w2a": _fold_flat(cc2, 0, C, Cp1, Cp2),
        "w2b": _fold_flat(cc2, C, 2 * C, Cp1, Cp2),
        "b2": _pad_bias(cc2, Cp2),
        "w5": _fold_flat(cu5, 0, 2 * C, Cp2, Cp2),
        "b5": _pad_bias(cu5, Cp2),
        # conv_concat3 Cin split: [x3_1 (C) | conv_upsample5 out (2C)]
        "w3a": _fold_flat(cc3, 0, C, Cp1, Cp3),
        "w3b": _fold_flat(cc3, C, 3 * C, Cp2, Cp3),
        "b3c": _pad_bias(cc3, Cp3),
        "w4": _fold_flat(cv4, 0, 3 * C, Cp3, Cp1),
        "b4": _pad_bias(cv4, Cp1),
    }


# ----------------------------------------------------------------------------
# Forward
# ----------------------------------------------------------------------------
def drm_v3_forward(params, x1, x2, x3):
    """params: prepare_drm_v3_params(...).  x1: (B, C, H, W); x2, x3:
    (B, C, 2H, 2W) NCHW, like PyTorch.  Returns (B, C, 2H, 2W) NCHW f32."""
    B, C, H, W = x1.shape
    H2, W2 = 2 * H, 2 * W
    HW = H2 * W2
    Cp1, Cp2, Cp3 = _pad8(C), _pad8(2 * C), _pad8(3 * C)

    def pad_c(x, cp):
        return jnp.pad(x, ((0, 0), (0, cp - x.shape[1]), (0, 0)))

    x1f = pad_c(x1.astype(jnp.float32).reshape(B, C, H * W), Cp1)
    x2f = pad_c(x2.astype(jnp.float32).reshape(B, C, HW), Cp1)
    x3f = pad_c(x3.astype(jnp.float32).reshape(B, C, HW), Cp1)

    upmat = _upsample_matrix(H, W)                 # (H*W, HW) f32
    masks = _tap_masks(H2, W2)                     # (9, HW) f32

    order = ("w124", "b124", "w3", "b3", "w2a", "w2b", "b2",
             "w5", "b5", "w3a", "w3b", "b3c", "w4", "b4")
    consts = [upmat, masks] + [params[k] for k in order]

    in_specs = (
        [pl.BlockSpec((1, Cp1, H * W), lambda b: (b, 0, 0)),
         pl.BlockSpec((1, Cp1, HW), lambda b: (b, 0, 0)),
         pl.BlockSpec((1, Cp1, HW), lambda b: (b, 0, 0))]
        + [pl.BlockSpec(a.shape, lambda b: (0, 0)) for a in consts])

    # rough cost hint for XLA's scheduler around the custom call
    k_sizes = [(3 * Cp1, 9 * Cp1), (Cp1, 9 * Cp1), (Cp2, 9 * Cp1),
               (Cp2, 9 * Cp1), (Cp2, 9 * Cp2), (Cp3, 9 * Cp1),
               (Cp3, 9 * Cp2), (Cp1, 9 * Cp3)]
    flops = B * (2 * Cp1 * (H * W) * HW
                 + sum(2 * m * k * HW for m, k in k_sizes))
    bytes_accessed = 4 * (x1f.size + x2f.size + x3f.size + B * Cp1 * HW
                          + sum(int(a.size) for a in consts))

    out = pl.pallas_call(
        _make_drm_kernel(Cp1, Cp2, Cp3, H2, W2, _roll_matches_numpy()),
        out_shape=jax.ShapeDtypeStruct((B, Cp1, HW), jnp.float32),
        grid_spec=pltpu.PrefetchScalarGridSpec(
            num_scalar_prefetch=0,
            grid=(B,),
            in_specs=in_specs,
            out_specs=pl.BlockSpec((1, Cp1, HW), lambda b: (b, 0, 0))),
        compiler_params=pltpu.CompilerParams(
            dimension_semantics=("parallel",),
            vmem_limit_bytes=32 * 1024 * 1024),
        cost_estimate=pl.CostEstimate(flops=int(flops), transcendentals=0,
                                      bytes_accessed=int(bytes_accessed)),
    )(x1f, x2f, x3f, *consts)

    return out[:, :C, :].reshape(B, C, H2, W2)


# ----------------------------------------------------------------------------
# Pure-JAX reference of the PyTorch module (for the correctness check)
# ----------------------------------------------------------------------------
def reference_forward(raw, x1, x2, x3):
    def basic_conv(p, x):
        y = lax.conv_general_dilated(
            x, p["w"], window_strides=(1, 1), padding="SAME",
            dimension_numbers=("NCHW", "OIHW", "NCHW"),
            precision=lax.Precision.HIGHEST)
        y = y * p["scale"].reshape(1, -1, 1, 1) + p["bias"].reshape(1, -1, 1, 1)
        return jnp.maximum(y, 0.0)

    def up2(x):
        _, _, h, w = x.shape
        ah = _interp_matrix(h, 2 * h)
        aw = _interp_matrix(w, 2 * w)
        y = jnp.einsum("oh,bchw->bcow", ah, x, precision=lax.Precision.HIGHEST)
        return jnp.einsum("pw,bcow->bcop", aw, y, precision=lax.Precision.HIGHEST)

    ux1 = up2(x1)
    x2_1 = basic_conv(raw["conv_upsample1"], ux1) * x2
    x3_1 = (basic_conv(raw["conv_upsample2"], ux1)
            * basic_conv(raw["conv_upsample3"], x2) * x3)
    x2_2 = basic_conv(
        raw["conv_concat2"],
        jnp.concatenate([x2_1, basic_conv(raw["conv_upsample4"], ux1)], axis=1))
    x3_2 = basic_conv(
        raw["conv_concat3"],
        jnp.concatenate([x3_1, basic_conv(raw["conv_upsample5"], x2_2)], axis=1))
    return basic_conv(raw["conv4"], x3_2)


# ----------------------------------------------------------------------------
# main
# ----------------------------------------------------------------------------
if __name__ == "__main__":
    key = jax.random.PRNGKey(0)
    channel = 4
    B, H, W = 2, 16, 16

    kp, k1, k2, k3 = jax.random.split(key, 4)
    raw_params = init_drm_v3_params(kp, channel)
    params = prepare_drm_v3_params(raw_params, channel)

    x1 = jax.random.normal(k1, (B, channel, H, W), jnp.float32)
    x2 = jax.random.normal(k2, (B, channel, 2 * H, 2 * W), jnp.float32)
    x3 = jax.random.normal(k3, (B, channel, 2 * H, 2 * W), jnp.float32)

    _roll_matches_numpy()          # run the tiny direction probe once up front

    fwd = jax.jit(drm_v3_forward)
    out = jax.block_until_ready(fwd(params, x1, x2, x3))

    assert out.shape == (B, channel, 2 * H, 2 * W), out.shape
    assert bool(jnp.all(jnp.isfinite(out)))

    # Correctness check against the pure-JAX reference of the PyTorch module.
    ref = jax.block_until_ready(jax.jit(reference_forward)(raw_params, x1, x2, x3))
    err = float(jnp.max(jnp.abs(out - ref)))
    tol = 2e-2 * float(jnp.max(jnp.abs(ref))) + 2e-3
    assert err <= tol, f"kernel/reference mismatch: max|err|={err}, tol={tol}"

    print("KERNEL_OK")
</pallas_src>

<mosaic_0001>
module attributes {stable_mosaic.version = 11 : i64} {
  func.func @k(%arg0: memref<8x128xf32, #tpu.memory_space<vmem>>, %arg1: memref<8x128xf32, #tpu.memory_space<vmem>>) attributes {dimension_semantics = [], scalar_prefetch = 0 : i64, scratch_operands = 0 : i64, tpu.core_type = #tpu.core_type<tc>} {
    %c0 = arith.constant 0 : index
    %c0_0 = arith.constant 0 : index
    %0 = vector.load %arg0[%c0, %c0_0] : memref<8x128xf32, #tpu.memory_space<vmem>>, vector<8x128xf32>
    %c1_i32 = arith.constant 1 : i32
    %1 = tpu.dynamic_rotate %0 by %c1_i32 dim 1 : vector<8x128xf32>, i32 -> vector<8x128xf32>
    %c0_1 = arith.constant 0 : index
    %c0_2 = arith.constant 0 : index
    %2 = vector.load %arg1[%c0_1, %c0_2] : memref<8x128xf32, #tpu.memory_space<vmem>>, vector<8x128xf32>
    tpu.vector_store %arg1[%c0_1, %c0_2], %1 {strides = array<i32>} : memref<8x128xf32, #tpu.memory_space<vmem>>, vector<8x128xf32>,
    return
  }
}

</mosaic_0001>

<llo_original>
// kernel: tpu_custom_call.1
$region0: #{tpu_custom_call.1}
  #allocation0 [shape = 'u32[]', space=smem, size = 0x4, offset = 0x4, fixed_abs, tag = 'smem constant byte address 0x4 - core index']
  #allocation1 [shape = 'u32[144,128]{1,0:T(1,128)}', space=vmem, size = 0x12000, scoped, tag = 'internal scratch']
  %s0 = inlined_call_operand.hbm [shape: f32[8,128], index: 0, kind: input, shape index: {}]
  %s1 = inlined_call_operand.hbm [shape: f32[8,128], index: 1, kind: output, shape index: {}]
  %s2 = sld [smem:[#allocation0]]
  $region18: #{tpu_custom_call.1} parent=0
    _
  %s4 = ssub.s32 1, %s2
  %s5 = scalar_select 0, %s4, %s2
  $region1: #{tpu_custom_call.1} parent=0
    #allocation2 [shape = 'u8[4096]{0}', space=vmem, size = 0x1000, scoped, tag = 'input window, operand 0, single buffered']
    #allocation3 [shape = 's32[1]{0}', space=sflag, size = 0x4, scoped, tag = 'scoped memory for tpu_custom_call.1']
    #allocation4 [shape = 's32[1]{0}', space=sflag, size = 0x4, scoped, tag = 'scoped memory for tpu_custom_call.1']
    #allocation5 [shape = 'u8[4096]{0}', space=vmem, size = 0x1000, scoped, tag = 'output window, operand 0, single buffered']
    %6 = vsyncpa [#allocation3], 0
    %7 = vsyncpa [#allocation4], 0
    // Predicated region
    $region2: #{tpu_custom_call.1} parent=1 // pred_check
      _
    $region3: #{tpu_custom_call.1} parent=1 // pred_check_branch
      %9 = sbr.rel (0) target = $region5
    $region4: #{tpu_custom_call.1} parent=1 // pred_region
      %s11 = ssub.s32 128, 128
      %12 = vsyncadd [#allocation3], %s11
      %s14 = sshll.u32 [#allocation2], 4
      %s15 = int_to_ptr.vmem [resolvable:$true] %s14
      %17 = dma.hbm_to_vmem [thread:$0]  %s0, 128, %s15, [#allocation3]
    $region5: #{tpu_custom_call.1} parent=1 // pred_fallthru
      _
    // Predicated region
    $region6: #{tpu_custom_call.1} parent=1 // pred_check
      _
    $region7: #{tpu_custom_call.1} parent=1 // pred_check_branch
      %19 = sbr.rel (0) target = $region9
    $region8: #{tpu_custom_call.1} parent=1 // pred_region
      %20 = dma.done [#allocation3], 128
    $region9: #{tpu_custom_call.1} parent=1 // pred_fallthru
      _
    %v21 = vld [vmem:[#allocation2] sm:$0xff]
    %22 = vrot.lane.b32.xlu0 %v21, 1
    %v23 = vpop.permute.xlu0 %22
    %24 = vst [vmem:[#allocation5] sm:$0xff] %v23
    // Predicated region
    $region10: #{tpu_custom_call.1} parent=1 // pred_check
      _
    $region11: #{tpu_custom_call.1} parent=1 // pred_check_branch
      %26 = sbr.rel (0) target = $region13
    $region12: #{tpu_custom_call.1} parent=1 // pred_region
      %s28 = ssub.s32 128, 128
      %29 = vsyncadd [#allocation4], %s28
      %s31 = sshll.u32 [#allocation5], 4
      %s32 = int_to_ptr.vmem [resolvable:$true] %s31
      %34 = dma.vmem_to_hbm [thread:$0]  %s32, 128, %s1, [#allocation4]
    $region13: #{tpu_custom_call.1} parent=1 // pred_fallthru
      _
    // Predicated region
    $region14: #{tpu_custom_call.1} parent=1 // pred_check
      _
    $region15: #{tpu_custom_call.1} parent=1 // pred_check_branch
      %36 = sbr.rel (0) target = $region17
    $region16: #{tpu_custom_call.1} parent=1 // pred_region
      %37 = dma.done [#allocation4], 128
    $region17: #{tpu_custom_call.1} parent=1 // pred_fallthru
      _
    %38 = vsyncpa [#allocation3], 1
    %39 = vsyncpa [#allocation4], 1

</llo_original>
